<compile_context>
chip_gen: v7x
topology: tpu7x:2x2x1
jax: 0.10.0
libtpu: 0.0.40
codegen_flags: <defaults>
</compile_context>

<pallas_src>
import functools

import jax
import jax.numpy as jnp
from jax.experimental import pallas as pl
from jax.experimental.pallas import tpu as pltpu


def _rmsnorm_kernel(x_ref, w_ref, o_ref, *, eps, keep_input_cast):
    x = x_ref[...].astype(jnp.float32)                     # (tm, H) f32
    variance = jnp.mean(x * x, axis=-1, keepdims=True)     # (tm, 1)
    inv = jax.lax.rsqrt(variance + eps)                    # EUP rsqrt
    h = x * inv
    if keep_input_cast:
        # Required for parity with PyTorch when input dtype is not f32:
        # hidden_states.to(input_dtype) happens *before* the weight multiply.
        h = h.astype(x_ref.dtype).astype(jnp.float32)
    o_ref[...] = (w_ref[...] * h).astype(o_ref.dtype)      # (tm, H)


def _sublane_pack_factor(dtype) -> int:
    itemsize = jnp.dtype(dtype).itemsize
    return 8 * max(1, 4 // itemsize)   # f32 -> 8, bf16/f16 -> 16, 8-bit -> 32


def _vmem_capacity_bytes() -> int:
    try:
        return int(pltpu.get_tpu_info().vmem_capacity_bytes)
    except Exception:
        # Conservative fallback (assume v7x-sized VMEM).
        return 64 * 1024 * 1024


def bitnet_rmsnorm(hidden_states, weight, eps=1e-6, *, row_tile=None, out_dtype=None):
    """hidden_states: (..., hidden); weight: (hidden,).

    out_dtype=None  -> strict PyTorch parity: weight is treated as f32, output is
                       promote(f32, input_dtype) (i.e. f32).
    out_dtype=bf16  -> bf16-cast HF deployment behavior: compute in f32, write bf16
                       (halves the output stream for bf16 inputs).
    """
    orig_shape = hidden_states.shape
    hidden = orig_shape[-1]
    rows = 1
    for d in orig_shape[:-1]:
        rows *= d

    in_dtype = hidden_states.dtype
    if out_dtype is None:
        # PyTorch promotion: weight(float32) * h(input_dtype)
        out_dtype = jnp.promote_types(jnp.float32, in_dtype)
    out_dtype = jnp.dtype(out_dtype)

    x2d = hidden_states.reshape(rows, hidden)
    w2d = weight.reshape(1, hidden).astype(jnp.float32)

    pack = _sublane_pack_factor(in_dtype)
    in_bytes = jnp.dtype(in_dtype).itemsize
    out_bytes = out_dtype.itemsize

    # Per-row VMEM footprint: double-buffered input + double-buffered output
    # + two materialized f32 temporaries (f32 copy of x, and h) inside the kernel.
    per_row_bytes = hidden * (2 * in_bytes + 2 * out_bytes + 2 * 4)

    # Generation-aware budget.
    vmem_cap = _vmem_capacity_bytes()
    if vmem_cap <= 64 * 1024 * 1024:
        # v7x: 64 MiB physical VMEM per TensorCore.
        tile_budget = 24 * 1024 * 1024
        limit_cap = 48 * 1024 * 1024
    else:
        # v5e / v6e: 128 MiB VMEM (v5e scoped default is only 16 MiB -> raise it).
        tile_budget = 56 * 1024 * 1024
        limit_cap = 96 * 1024 * 1024

    if row_tile is None:
        row_tile = max(pack, (tile_budget // per_row_bytes) // pack * pack)
        row_tile = min(row_tile, 2048)
    # Never ask for a tile bigger than the (pack-aligned) row count.
    row_tile = min(row_tile, pl.cdiv(rows, pack) * pack)
    row_tile = max(row_tile, pack)

    # No wrapper-side padding: let Pallas mask the partial last block.  Per-row
    # reductions stay inside a block, so garbage boundary rows can't leak.
    grid = (pl.cdiv(rows, row_tile),)

    # Scoped VMEM sized consistently with per_row_bytes (plus 1 MiB slack).
    vmem_needed = row_tile * per_row_bytes + (1 << 20)
    vmem_limit = int(min(max(vmem_needed, 16 << 20), limit_cap))

    kernel = functools.partial(
        _rmsnorm_kernel,
        eps=eps,
        keep_input_cast=(jnp.dtype(in_dtype) != jnp.dtype(jnp.float32)),
    )

    out2d = pl.pallas_call(
        kernel,
        out_shape=jax.ShapeDtypeStruct((rows, hidden), out_dtype),
        grid_spec=pltpu.PrefetchScalarGridSpec(
            num_scalar_prefetch=0,
            grid=grid,
            in_specs=[
                pl.BlockSpec((row_tile, hidden), lambda i: (i, 0)),
                pl.BlockSpec((1, hidden), lambda i: (0, 0)),
            ],
            out_specs=pl.BlockSpec((row_tile, hidden), lambda i: (i, 0)),
        ),
        compiler_params=pltpu.CompilerParams(
            dimension_semantics=("parallel",),
            vmem_limit_bytes=vmem_limit,
        ),
    )(x2d, w2d)

    return out2d.reshape(orig_shape[:-1] + (hidden,))


def _reference(x, weight, eps):
    x32 = x.astype(jnp.float32)
    var = jnp.mean(x32 * x32, axis=-1, keepdims=True)
    h = (x32 * jax.lax.rsqrt(var + eps)).astype(x.dtype)
    return weight.astype(jnp.float32) * h


if __name__ == "__main__":
    batch, seq, hidden = 2, 8, 32
    eps = 1e-6

    key = jax.random.PRNGKey(0)
    x = jax.random.normal(key, (batch, seq, hidden), dtype=jnp.float32)

    # Deterministic parameter init, matching nn.Parameter(torch.ones(hidden_size)).
    weight = jnp.ones((hidden,), dtype=jnp.float32)

    # f32 path (strict parity)
    out = jax.block_until_ready(bitnet_rmsnorm(x, weight, eps=eps))
    ref = _reference(x, weight, eps)
    assert out.shape == ref.shape and out.dtype == ref.dtype
    assert jnp.allclose(out, ref, atol=1e-5, rtol=1e-5)

    # bf16 path (exercises the preserved intermediate cast; output promotes to f32)
    x_bf16 = x.astype(jnp.bfloat16)
    out_bf16 = jax.block_until_ready(bitnet_rmsnorm(x_bf16, weight, eps=eps))
    ref_bf16 = _reference(x_bf16, weight, eps)
    assert out_bf16.shape == ref_bf16.shape and out_bf16.dtype == ref_bf16.dtype
    assert jnp.allclose(out_bf16, ref_bf16, atol=2e-2, rtol=2e-2)

    # bf16-in / bf16-out path (opt-in reduced-write-traffic mode)
    out_bf16_bf16 = jax.block_until_ready(
        bitnet_rmsnorm(x_bf16, weight, eps=eps, out_dtype=jnp.bfloat16)
    )
    assert out_bf16_bf16.dtype == jnp.bfloat16
    assert jnp.allclose(
        out_bf16_bf16.astype(jnp.float32), ref_bf16, atol=4e-2, rtol=4e-2
    )

    # Partial-block path: rows not a multiple of row_tile (masked last block, no pad).
    x_odd = jax.random.normal(jax.random.PRNGKey(0), (13, hidden), dtype=jnp.float32)
    out_odd = jax.block_until_ready(bitnet_rmsnorm(x_odd, weight, eps=eps, row_tile=8))
    ref_odd = _reference(x_odd, weight, eps)
    assert out_odd.shape == ref_odd.shape
    assert jnp.allclose(out_odd, ref_odd, atol=1e-5, rtol=1e-5)

    print("KERNEL_OK")
</pallas_src>

<mosaic_0001>
module attributes {stable_mosaic.version = 11 : i64} {
  func.func @_rmsnorm_kernel(%arg0: i32, %arg1: memref<16x32xf32, #tpu.memory_space<vmem>>, %arg2: memref<1x32xf32, #tpu.memory_space<vmem>>, %arg3: memref<16x32xf32, #tpu.memory_space<vmem>>) attributes {dimension_semantics = [#tpu.dimension_semantics<parallel>], iteration_bounds = array<i64: 1>, scalar_prefetch = 0 : i64, scratch_operands = 0 : i64, tpu.core_type = #tpu.core_type<tc>, window_params = [{transform_indices = @transform_0, window_bounds = array<i64: 16, 32>}, {pipeline_mode = #tpu.pipeline_mode<synchronous>, transform_indices = @transform_1, window_bounds = array<i64: 1, 32>}, {transform_indices = @transform_2, window_bounds = array<i64: 16, 32>}]} {
    %c0 = arith.constant 0 : index
    %c0_0 = arith.constant 0 : index
    %0 = vector.load %arg1[%c0, %c0_0] : memref<16x32xf32, #tpu.memory_space<vmem>>, vector<16x32xf32>
    %1 = arith.mulf %0, %0 : vector<16x32xf32>
    %cst = arith.constant dense<0.000000e+00> : vector<16xf32>
    %2 = vector.multi_reduction <add>, %1, %cst [1] : vector<16x32xf32> to vector<16xf32>
    %3 = vector.shape_cast %2 : vector<16xf32> to vector<16x1xf32>
    %cst_1 = arith.constant 3.200000e+01 : f32
    %4 = vector.broadcast %cst_1 : f32 to vector<16x1xf32>
    %5 = arith.divf %3, %4 : vector<16x1xf32>
    %cst_2 = arith.constant 9.99999997E-7 : f32
    %6 = vector.broadcast %cst_2 : f32 to vector<16x1xf32>
    %7 = arith.addf %5, %6 : vector<16x1xf32>
    %8 = math.rsqrt %7 : vector<16x1xf32>
    %9 = vector.broadcast %8 : vector<16x1xf32> to vector<16x32xf32>
    %10 = arith.mulf %0, %9 : vector<16x32xf32>
    %c0_3 = arith.constant 0 : index
    %c0_4 = arith.constant 0 : index
    %11 = vector.load %arg2[%c0_3, %c0_4] : memref<1x32xf32, #tpu.memory_space<vmem>>, vector<1x32xf32>
    %12 = vector.broadcast %11 : vector<1x32xf32> to vector<16x32xf32>
    %13 = arith.mulf %12, %10 : vector<16x32xf32>
    %c0_5 = arith.constant 0 : index
    %c0_6 = arith.constant 0 : index
    %14 = vector.load %arg3[%c0_5, %c0_6] : memref<16x32xf32, #tpu.memory_space<vmem>>, vector<16x32xf32>
    tpu.vector_store %arg3[%c0_5, %c0_6], %13 {strides = array<i32>} : memref<16x32xf32, #tpu.memory_space<vmem>>, vector<16x32xf32>,
    return
  }
  func.func @transform_0(%arg0: i32) -> (i32, i32) {
    %c0_i32 = arith.constant 0 : i32
    %c0_i32_0 = arith.constant 0 : i32
    return %arg0, %c0_i32 : i32, i32
  }
  func.func @transform_1(%arg0: i32) -> (i32, i32) {
    %c0_i32 = arith.constant 0 : i32
    %c0_i32_0 = arith.constant 0 : i32
    %c0_i32_1 = arith.constant 0 : i32
    return %c0_i32, %c0_i32_0 : i32, i32
  }
  func.func @transform_2(%arg0: i32) -> (i32, i32) {
    %c0_i32 = arith.constant 0 : i32
    %c0_i32_0 = arith.constant 0 : i32
    return %arg0, %c0_i32 : i32, i32
  }
}

</mosaic_0001>

<llo_original>
// kernel: tpu_custom_call.1
$region0: #{tpu_custom_call.1}
  #allocation0 [shape = 'u32[]', space=smem, size = 0x4, offset = 0x4, fixed_abs, tag = 'smem constant byte address 0x4 - core index']
  #allocation1 [shape = 'u32[144,128]{1,0:T(1,128)}', space=vmem, size = 0x12000, scoped, tag = 'internal scratch']
  %s0 = inlined_call_operand.hbm [shape: f32[16,32], index: 0, kind: input, shape index: {}]
  %s1 = inlined_call_operand.vmem [shape: f32[1,32], index: 1, kind: input, shape index: {}]
  %s2 = inlined_call_operand.hbm [shape: f32[16,32], index: 2, kind: output, shape index: {}]
  %s3 = sld [smem:[#allocation0]]
  $region22: #{tpu_custom_call.1} parent=0
    _
  %s5 = ssub.s32 1, %s3
  %s6 = scalar_select 0, %s5, %s3
  $region1: #{tpu_custom_call.1} parent=0
    #allocation2 [shape = 'u8[8192]{0}', space=vmem, size = 0x2000, scoped, tag = 'input window, operand 0, single buffered']
    #allocation3 [shape = 's32[1]{0}', space=sflag, size = 0x4, scoped, tag = 'scoped memory for tpu_custom_call.1']
    #allocation4 [shape = 's32[1]{0}', space=sflag, size = 0x4, scoped, tag = 'scoped memory for tpu_custom_call.1']
    #allocation5 [shape = 'u8[8192]{0}', space=vmem, size = 0x2000, scoped, tag = 'output window, operand 0, single buffered']
    %7 = vsyncpa [#allocation3], 0
    %8 = vsyncpa [#allocation4], 0
    // Predicated region
    $region2: #{tpu_custom_call.1} parent=1 // pred_check
      _
    $region3: #{tpu_custom_call.1} parent=1 // pred_check_branch
      %10 = sbr.rel (0) target = $region5
    $region4: #{tpu_custom_call.1} parent=1 // pred_region
      %s12 = ssub.s32 256, 256
      %13 = vsyncadd [#allocation3], %s12
      %s14 = sshll.u32 [#allocation2], 4
      %s15 = int_to_ptr.vmem [resolvable:$true] %s14
      %20 = dma.hbm_to_vmem [thread:$0]  %s0, 256, %s15, [#allocation3], 128, 128, 8
    $region5: #{tpu_custom_call.1} parent=1 // pred_fallthru
      _
    // Predicated region
    $region6: #{tpu_custom_call.1} parent=1 // pred_check
      _
    $region7: #{tpu_custom_call.1} parent=1 // pred_check_branch
      %22 = sbr.rel (0) target = $region9
    $region8: #{tpu_custom_call.1} parent=1 // pred_region
      _
    $region9: #{tpu_custom_call.1} parent=1 // pred_fallthru
      _
    // Predicated region
    $region10: #{tpu_custom_call.1} parent=1 // pred_check
      _
    $region11: #{tpu_custom_call.1} parent=1 // pred_check_branch
      %24 = sbr.rel (0) target = $region13
    $region12: #{tpu_custom_call.1} parent=1 // pred_region
      %25 = dma.done [#allocation3], 256
    $region13: #{tpu_custom_call.1} parent=1 // pred_fallthru
      _
    %v26 = vld [vmem:[#allocation2] sm:$0xff]
    %v27 = vld [vmem:[#allocation2 + $0x8] sm:$0xff]
    %v28 = vmul.f32 %v26, %v26
    %v29 = vmul.f32 %v27, %v27
    %vm30 = vcmask 261120
    %v31 = vsel %vm30, %v28, 0.0
    %32 = vadd.xlane.f32.xlu0 %v31
    %v33 = vpop.xlane.xlu0 %32
    %v34 = vsel %vm30, %v29, 0.0
    %35 = vadd.xlane.f32.xlu0 %v34
    %v36 = vpop.xlane.xlu0 %35
    %v37 = vrcp.pop 32.0
    %v38 = vmul.f32 %v33, %v37
    %v39 = vmul.f32 %v36, %v37
    %v40 = vadd.f32 %v38, 1e-06
    %v41 = vadd.f32 %v39, 1e-06
    %v42 = vrsqrt.pop %v40
    %v43 = vrsqrt.pop %v41
    %v44 = vmul.f32 %v26, %v42
    %v45 = vmul.f32 %v27, %v43
    %v46 = vld [vmem:[%s1] sm:$0x1]
    %v48 = vlaneseq
    %v49 = vshrl.u32 %v48, 7
    %v50 = vsub.s32 0, %v49
    %v51 = vrot.slane %v46, %v50
    %v53 = vmul.f32 %v51, %v44
    %v54 = vmul.f32 %v51, %v45
    %55 = vst.msk [vmem:[#allocation5] sm:$0xff] %vm30, %v53
    %56 = vst.msk [vmem:[#allocation5 + $0x8] sm:$0xff] %vm30, %v54
    // Predicated region
    $region14: #{tpu_custom_call.1} parent=1 // pred_check
      _
    $region15: #{tpu_custom_call.1} parent=1 // pred_check_branch
      %58 = sbr.rel (0) target = $region17
    $region16: #{tpu_custom_call.1} parent=1 // pred_region
      %s60 = ssub.s32 256, 256
      %61 = vsyncadd [#allocation4], %s60
      %s62 = sshll.u32 [#allocation5], 4
      %s63 = int_to_ptr.vmem [resolvable:$true] %s62
      %68 = dma.vmem_to_hbm [thread:$0]  %s63, 256, %s2, [#allocation4], 128, 128, 8
    $region17: #{tpu_custom_call.1} parent=1 // pred_fallthru
      _
    // Predicated region
    $region18: #{tpu_custom_call.1} parent=1 // pred_check
      _
    $region19: #{tpu_custom_call.1} parent=1 // pred_check_branch
      %70 = sbr.rel (0) target = $region21
    $region20: #{tpu_custom_call.1} parent=1 // pred_region
      %71 = dma.done [#allocation4], 256
    $region21: #{tpu_custom_call.1} parent=1 // pred_fallthru
      _
    %72 = vsyncpa [#allocation3], 1
    %73 = vsyncpa [#allocation4], 1

</llo_original>
